<compile_context>
chip_gen: v7x
topology: tpu7x:2x2x1
jax: 0.10.0
libtpu: 0.0.40
codegen_flags: <defaults>
</compile_context>

<pallas_src>
import functools

import jax
import jax.numpy as jnp
from jax.experimental import pallas as pl
from jax.experimental.pallas import tpu as pltpu


def _sublane_multiple(dtype):
    # Minimum legal second-to-last block dim per dtype packing:
    # f32 -> 8, bf16 -> 16, int8/fp8 -> 32.
    return max(8, 32 // jnp.dtype(dtype).itemsize)


def _vmem_budget_bytes():
    # Generation-aware VMEM budget: 3/4 of physical per-core VMEM
    # (v5e/v6e: 128 MiB -> 96 MiB budget; v7x: 64 MiB -> 48 MiB budget).
    cap = 64 * 1024 * 1024
    try:
        info = pltpu.get_tpu_info()
        cap = int(getattr(info, "vmem_capacity_bytes", cap))
    except Exception:
        pass
    return max(4 * 1024 * 1024, (cap * 3) // 4)


def _pick_tm(n_rows, d, dtype, vmem_budget, tm_request=None):
    """Row-tile size: as big as the VMEM budget allows (amortizes the ~0.35 us
    per-grid-step overhead), never larger than the row count (keeps the block legal)."""
    sub = _sublane_multiple(dtype)
    if n_rows <= sub:
        return n_rows                       # full-extent row block: always legal
    itemsize = jnp.dtype(dtype).itemsize
    # Per-row VMEM cost: input + output tiles double-buffered (4x itemsize) plus ~3
    # fp32 temporaries (x, xc, y) live in the working block.
    bytes_per_row = d * (4 * itemsize + 3 * 4)
    fit = max(sub, vmem_budget // max(1, bytes_per_row))
    tm = 8192 if tm_request is None else int(tm_request)
    tm = min(tm, fit, n_rows)
    return max(sub, (tm // sub) * sub)


def layernorm_kernel(x_ref, gamma_ref, beta_ref, o_ref, *, eps, approx_reciprocal):
    # x_ref: (TM, D) row tile (streamed); gamma/beta: (1, D), VMEM-resident across grid.
    x = x_ref[...].astype(jnp.float32)
    d = x.shape[-1]
    # Cross-lane row reductions stay on the XLU.  (If a bundle dump shows the 2-XLU
    # path binding on v6e/v7x, these could be offloaded to the idle MXU via
    # jnp.dot(x, ones((D, 1), f32)); kept simple here.)
    mean = jnp.mean(x, axis=-1, keepdims=True)
    xc = x - mean
    # torch.Tensor.std() defaults to the unbiased estimator (divide by D - 1),
    # and the module divides by (std + eps), NOT sqrt(var + eps).
    var = jnp.sum(xc * xc, axis=-1, keepdims=True) * (1.0 / (d - 1))
    std = jnp.sqrt(var)
    # Column reciprocal (EUP slot when approx=True) + broadcast multiply, instead of a
    # full-tile broadcast divide on the VALU.
    inv = pl.reciprocal(std + eps, approx=approx_reciprocal)
    y = gamma_ref[...].astype(jnp.float32) * (xc * inv) \
        + beta_ref[...].astype(jnp.float32)
    o_ref[...] = y.astype(o_ref.dtype)


def layernorm_pallas(x, gamma, beta, *, eps=1e-6, tm=None, approx_reciprocal=True):
    """Torch-style LayerNorm over the last axis: (..., D) -> (..., D)."""
    orig_shape = x.shape
    D = orig_shape[-1]
    N = 1
    for s in orig_shape[:-1]:
        N *= s
    x2 = x.reshape(N, D)                       # contiguous reshape: no copy

    vmem_budget = _vmem_budget_bytes()
    tm = _pick_tm(N, D, x.dtype, vmem_budget, tm_request=tm)
    n_blocks = pl.cdiv(N, tm)                  # ragged last block: masked on writeback

    gamma2 = gamma.reshape(1, D)
    beta2 = beta.reshape(1, D)

    out = pl.pallas_call(
        functools.partial(layernorm_kernel, eps=eps,
                          approx_reciprocal=approx_reciprocal),
        out_shape=jax.ShapeDtypeStruct((N, D), x.dtype),
        grid=(n_blocks,),
        in_specs=[
            pl.BlockSpec((tm, D), lambda i: (i, 0)),   # x rows: streamed / double-buffered
            pl.BlockSpec((1, D), lambda i: (0, 0)),    # gamma: VMEM-resident
            pl.BlockSpec((1, D), lambda i: (0, 0)),    # beta:  VMEM-resident
        ],
        out_specs=pl.BlockSpec((tm, D), lambda i: (i, 0)),
        compiler_params=pltpu.CompilerParams(
            # Independent rows -> shard the row axis across cores where available
            # (v7x megacore).  If xprof ever shows one TC idle, switch to
            # pltpu.CORE_PARALLEL on this axis.
            dimension_semantics=("parallel",),
            vmem_limit_bytes=int(vmem_budget)),
    )(x2, gamma2, beta2)

    return out.reshape(orig_shape)


def visual_ode_decoder_forward(x, memory, src_mask, tgt_mask, gamma, beta,
                               *, eps=1e-6, tol=1e-3, tm=None, approx_reciprocal=True):
    """Forward pass of Visual_ODE_Decoder.

    x: (B, x_len, D) target-side state, memory: (B, mem_len, D) encoder output.
    """
    del memory, src_mask, tgt_mask, tol       # consumed only by the external ode_layer
    # TODO(synk): odeint(self.ode_layer, cat([x, memory], 1), [0, 1], rtol=tol, atol=tol)
    # cannot be implemented here: ode_layer (a transformer decoder layer with
    # self_attn/src_attn and set_forward_attributes) is an external module not defined
    # in the spec, so the ODE stage is a zero-derivative pass-through.  Under that
    # pass-through, out[1][:, :x_len, :d_model] == x exactly, so the concat + slice is
    # elided (it would only add a full-tensor HBM round trip around a mem-bound kernel).
    return visual_ode_decoder_norm_only(x, gamma, beta, eps=eps, tm=tm,
                                        approx_reciprocal=approx_reciprocal)


def visual_ode_decoder_norm_only(y, gamma, beta, *, eps, tm, approx_reciprocal):
    return layernorm_pallas(y, gamma, beta, eps=eps, tm=tm,
                            approx_reciprocal=approx_reciprocal)


if __name__ == "__main__":
    B, X_LEN, MEM_LEN, D_MODEL = 2, 9, 16, 128
    EPS = 1e-6

    key = jax.random.PRNGKey(0)
    kx, km, kg, kb = jax.random.split(key, 4)

    x = jax.random.normal(kx, (B, X_LEN, D_MODEL), dtype=jnp.float32)
    memory = jax.random.normal(km, (B, MEM_LEN, D_MODEL), dtype=jnp.float32)
    src_mask = jnp.ones((B, 1, MEM_LEN), dtype=jnp.bool_)
    tgt_mask = jnp.tril(jnp.ones((X_LEN, X_LEN), dtype=jnp.bool_))[None]

    # LayerNorm parameters (module inits a_2=ones, b_2=zeros; perturb so the affine
    # part of the kernel is actually exercised).
    gamma = 1.0 + 0.1 * jax.random.normal(kg, (D_MODEL,), dtype=jnp.float32)
    beta = 0.1 * jax.random.normal(kb, (D_MODEL,), dtype=jnp.float32)

    # Pure-JAX reference replicating the torch module (with the ODE pass-through).
    y = x
    mean = y.mean(-1, keepdims=True)
    std = jnp.std(y, axis=-1, keepdims=True, ddof=1)   # torch .std() is unbiased
    ref = gamma * (y - mean) / (std + EPS) + beta

    # 1) Exact-reciprocal path with tm=8 so the toy shape (N = 18 rows) exercises a
    #    multi-step grid with a ragged final block (8 + 8 + 2 rows).
    out_exact = visual_ode_decoder_forward(x, memory, src_mask, tgt_mask, gamma, beta,
                                           eps=EPS, tm=8, approx_reciprocal=False)
    out_exact = jax.block_until_ready(out_exact)
    assert out_exact.shape == (B, X_LEN, D_MODEL)
    err_exact = float(jnp.max(jnp.abs(out_exact - ref)))
    assert jnp.allclose(out_exact, ref, atol=1e-5, rtol=1e-5), err_exact

    # 2) Default fast path: auto-sized tile (clamped to the toy row count -> tm=16,
    #    ragged last block) + EUP approximate reciprocal (looser tolerance).
    out_fast = visual_ode_decoder_forward(x, memory, src_mask, tgt_mask, gamma, beta,
                                          eps=EPS)
    out_fast = jax.block_until_ready(out_fast)
    assert out_fast.shape == (B, X_LEN, D_MODEL)
    err_fast = float(jnp.max(jnp.abs(out_fast - ref)))
    assert jnp.allclose(out_fast, ref, atol=5e-3, rtol=5e-3), err_fast

    print("KERNEL_OK")
</pallas_src>

<mosaic_0001>
module attributes {stable_mosaic.version = 11 : i64} {
  func.func @layernorm_kernel(%arg0: i32, %arg1: memref<8x128xf32, #tpu.memory_space<vmem>>, %arg2: memref<1x128xf32, #tpu.memory_space<vmem>>, %arg3: memref<1x128xf32, #tpu.memory_space<vmem>>, %arg4: memref<8x128xf32, #tpu.memory_space<vmem>>) attributes {dimension_semantics = [#tpu.dimension_semantics<parallel>], iteration_bounds = array<i64: 3>, scalar_prefetch = 0 : i64, scratch_operands = 0 : i64, tpu.core_type = #tpu.core_type<tc>, window_params = [{transform_indices = @transform_0, window_bounds = array<i64: 8, 128>}, {pipeline_mode = #tpu.pipeline_mode<synchronous>, transform_indices = @transform_1, window_bounds = array<i64: 1, 128>}, {pipeline_mode = #tpu.pipeline_mode<synchronous>, transform_indices = @transform_2, window_bounds = array<i64: 1, 128>}, {transform_indices = @transform_3, window_bounds = array<i64: 8, 128>}]} {
    %c0 = arith.constant 0 : index
    %c0_0 = arith.constant 0 : index
    %0 = vector.load %arg1[%c0, %c0_0] : memref<8x128xf32, #tpu.memory_space<vmem>>, vector<8x128xf32>
    %cst = arith.constant dense<0.000000e+00> : vector<8xf32>
    %1 = vector.multi_reduction <add>, %0, %cst [1] : vector<8x128xf32> to vector<8xf32>
    %2 = vector.shape_cast %1 : vector<8xf32> to vector<8x1xf32>
    %cst_1 = arith.constant 1.280000e+02 : f32
    %3 = vector.broadcast %cst_1 : f32 to vector<8x1xf32>
    %4 = arith.divf %2, %3 : vector<8x1xf32>
    %5 = vector.broadcast %4 : vector<8x1xf32> to vector<8x128xf32>
    %6 = arith.subf %0, %5 : vector<8x128xf32>
    %7 = arith.mulf %6, %6 : vector<8x128xf32>
    %cst_2 = arith.constant dense<0.000000e+00> : vector<8xf32>
    %8 = vector.multi_reduction <add>, %7, %cst_2 [1] : vector<8x128xf32> to vector<8xf32>
    %9 = vector.shape_cast %8 : vector<8xf32> to vector<8x1xf32>
    %cst_3 = arith.constant 0.00787401571 : f32
    %10 = vector.broadcast %cst_3 : f32 to vector<8x1xf32>
    %11 = arith.mulf %9, %10 : vector<8x1xf32>
    %12 = math.sqrt %11 : vector<8x1xf32>
    %cst_4 = arith.constant 9.99999997E-7 : f32
    %13 = vector.broadcast %cst_4 : f32 to vector<8x1xf32>
    %14 = arith.addf %12, %13 : vector<8x1xf32>
    %15 = tpu.reciprocal %14 : vector<8x1xf32> -> vector<8x1xf32>
    %c0_5 = arith.constant 0 : index
    %c0_6 = arith.constant 0 : index
    %16 = vector.load %arg2[%c0_5, %c0_6] : memref<1x128xf32, #tpu.memory_space<vmem>>, vector<1x128xf32>
    %17 = vector.broadcast %15 : vector<8x1xf32> to vector<8x128xf32>
    %18 = arith.mulf %6, %17 : vector<8x128xf32>
    %19 = vector.broadcast %16 : vector<1x128xf32> to vector<8x128xf32>
    %20 = arith.mulf %19, %18 : vector<8x128xf32>
    %c0_7 = arith.constant 0 : index
    %c0_8 = arith.constant 0 : index
    %21 = vector.load %arg3[%c0_7, %c0_8] : memref<1x128xf32, #tpu.memory_space<vmem>>, vector<1x128xf32>
    %22 = vector.broadcast %21 : vector<1x128xf32> to vector<8x128xf32>
    %23 = arith.addf %20, %22 : vector<8x128xf32>
    %c0_9 = arith.constant 0 : index
    %c0_10 = arith.constant 0 : index
    %24 = vector.load %arg4[%c0_9, %c0_10] : memref<8x128xf32, #tpu.memory_space<vmem>>, vector<8x128xf32>
    tpu.vector_store %arg4[%c0_9, %c0_10], %23 {strides = array<i32>} : memref<8x128xf32, #tpu.memory_space<vmem>>, vector<8x128xf32>,
    return
  }
  func.func @transform_0(%arg0: i32) -> (i32, i32) {
    %c0_i32 = arith.constant 0 : i32
    %c0_i32_0 = arith.constant 0 : i32
    return %arg0, %c0_i32 : i32, i32
  }
  func.func @transform_1(%arg0: i32) -> (i32, i32) {
    %c0_i32 = arith.constant 0 : i32
    %c0_i32_0 = arith.constant 0 : i32
    %c0_i32_1 = arith.constant 0 : i32
    return %c0_i32, %c0_i32_0 : i32, i32
  }
  func.func @transform_2(%arg0: i32) -> (i32, i32) {
    %c0_i32 = arith.constant 0 : i32
    %c0_i32_0 = arith.constant 0 : i32
    %c0_i32_1 = arith.constant 0 : i32
    return %c0_i32, %c0_i32_0 : i32, i32
  }
  func.func @transform_3(%arg0: i32) -> (i32, i32) {
    %c0_i32 = arith.constant 0 : i32
    %c0_i32_0 = arith.constant 0 : i32
    return %arg0, %c0_i32 : i32, i32
  }
}

</mosaic_0001>

<llo_original>
// kernel: tpu_custom_call.1
$region0: #{tpu_custom_call.1}
  #allocation0 [shape = 'u32[]', space=smem, size = 0x4, offset = 0x4, fixed_abs, tag = 'smem constant byte address 0x4 - core index']
  #allocation1 [shape = 'u32[144,128]{1,0:T(1,128)}', space=vmem, size = 0x12000, scoped, tag = 'internal scratch']
  %s0 = inlined_call_operand.hbm [shape: f32[18,128], index: 0, kind: input, shape index: {}]
  %s1 = inlined_call_operand.vmem [shape: f32[1,128], index: 1, kind: input, shape index: {}]
  %s2 = inlined_call_operand.vmem [shape: f32[1,128], index: 2, kind: input, shape index: {}]
  %s3 = inlined_call_operand.hbm [shape: f32[18,128], index: 3, kind: output, shape index: {}]
  %s4 = sld [smem:[#allocation0]]
  $region49: #{tpu_custom_call.1} parent=0
    _
  %s6 = ssub.s32 1, %s4
  %s7 = scalar_select 0, %s6, %s4
  $region1: #{tpu_custom_call.1} parent=0
    #allocation2 [shape = 'u8[8192]{0}', space=vmem, size = 0x2000, scoped, tag = 'input window, operand 0']
    #allocation3 [shape = 's32[2]{0}', space=sflag, size = 0x8, scoped, tag = 'scoped memory for tpu_custom_call.1']
    #allocation4 [shape = 's32[2]{0}', space=sflag, size = 0x8, scoped, tag = 'scoped memory for tpu_custom_call.1']
    #allocation5 [shape = 'u8[8192]{0}', space=vmem, size = 0x2000, scoped, tag = 'output window, operand 0']
    %8 = vsyncpa [#allocation3], 0
    %s9 = scalar_lea.sflag [#allocation3], 1
    %10 = vsyncpa %s9, 0
    %11 = vsyncpa [#allocation4], 0
    %s12 = scalar_lea.sflag [#allocation4], 1
    %13 = vsyncpa %s12, 0
    loop: start=0, step=1, limit=5
    $region2: #{tpu_custom_call.1} parent=1 // loop_pre_header
      _
    $region3: #{tpu_custom_call.1} parent=1 // loop_header
      %s15 = sphi 0, %s19
      %p16 = scmp.ge.s32.totalorder %s15, 5
      %s25 = sphi 0, %s27
      %s28 = sphi 0, %s25
      %s29 = sphi 0, %s28
      %s45 = sphi 0, %s29
      %s49 = sphi 0, %s49
      %s51 = sphi 0, %s49
      %s52 = sphi 0, %s51
      %s66 = sphi 0, %s52
      %s70 = sphi 0, %s70
      %s72 = sphi 0, %s70
      %s73 = sphi 0, %s72
      %s87 = sphi 0, %s73
      %s93 = sphi 0, %s95
      %s96 = sphi 0, %s93
      %s97 = sphi 0, %s96
      %s113 = sphi 0, %s97
    $region4: #{tpu_custom_call.1} parent=1 // loop_header_branch
      %18 = sbr.rel (%p16) target = $region8
    $region5: #{tpu_custom_call.1} parent=1 // loop_body
      %s20 = ssub.s32 %s15, 1
      %s21 = ssub.s32 %s15, 2
      %s22 = sadd.s32 %s15, 1
      %s23 = ssub.s32 %s15, %s22
      %p24 = scmp.eq.s32.totalorder %s23, 0
      %s26 = sadd.s32 %s25, 1
      %s27 = scalar_select %p24, %s25, %s26
      %p30 = pneg %p24
      %p31 = scmp.eq.s32.totalorder %s15, 2
      %p32 = por %p30, %p31
      %p33 = scmp.ne.s32.totalorder %s25, %s28
      %p34 = scmp.eq.s32.totalorder %s15, 0
      %p35 = por %p33, %p34
      %p36 = scmp.ne.s32.totalorder %s25, %s28
      %p37 = scmp.eq.s32.totalorder %s20, 2
      %p38 = por %p36, %p37
      %p39 = scmp.ne.s32.totalorder %s28, %s29
      %p40 = scmp.eq.s32.totalorder %s20, 0
      %p41 = por %p39, %p40
      %p42 = scmp.ne.s32.totalorder %s28, %s29
      %p43 = scmp.eq.s32.totalorder %s21, 2
      %p44 = por %p42, %p43
      %p46 = scmp.ne.s32.totalorder %s29, %s45
      %p47 = scmp.eq.s32.totalorder %s21, 0
      %p48 = por %p46, %p47
      %s50 = sadd.s32 %s49, 1
      %p53 = scmp.eq.s32.totalorder %s15, 2
      %p54 = scmp.ne.s32.totalorder %s49, %s51
      %p55 = scmp.eq.s32.totalorder %s15, 0
      %p56 = por %p54, %p55
      %p57 = scmp.ne.s32.totalorder %s49, %s51
      %p58 = scmp.eq.s32.totalorder %s20, 2
      %p59 = por %p57, %p58
      %p60 = scmp.ne.s32.totalorder %s51, %s52
      %p61 = scmp.eq.s32.totalorder %s20, 0
      %p62 = por %p60, %p61
      %p63 = scmp.ne.s32.totalorder %s51, %s52
      %p64 = scmp.eq.s32.totalorder %s21, 2
      %p65 = por %p63, %p64
      %p67 = scmp.ne.s32.totalorder %s52, %s66
      %p68 = scmp.eq.s32.totalorder %s21, 0
      %p69 = por %p67, %p68
      %s71 = sadd.s32 %s70, 1
      %p74 = scmp.eq.s32.totalorder %s15, 2
      %p75 = scmp.ne.s32.totalorder %s70, %s72
      %p76 = scmp.eq.s32.totalorder %s15, 0
      %p77 = por %p75, %p76
      %p78 = scmp.ne.s32.totalorder %s70, %s72
      %p79 = scmp.eq.s32.totalorder %s20, 2
      %p80 = por %p78, %p79
      %p81 = scmp.ne.s32.totalorder %s72, %s73
      %p82 = scmp.eq.s32.totalorder %s20, 0
      %p83 = por %p81, %p82
      %p84 = scmp.ne.s32.totalorder %s72, %s73
      %p85 = scmp.eq.s32.totalorder %s21, 2
      %p86 = por %p84, %p85
      %p88 = scmp.ne.s32.totalorder %s73, %s87
      %p89 = scmp.eq.s32.totalorder %s21, 0
      %p90 = por %p88, %p89
      %s91 = ssub.s32 %s15, %s22
      %p92 = scmp.eq.s32.totalorder %s91, 0
      %s94 = sadd.s32 %s93, 1
      %s95 = scalar_select %p92, %s93, %s94
      %p98 = pneg %p92
      %p99 = scmp.eq.s32.totalorder %s15, 2
      %p100 = por %p98, %p99
      %p101 = scmp.ne.s32.totalorder %s93, %s96
      %p102 = scmp.eq.s32.totalorder %s15, 0
      %p103 = por %p101, %p102
      %p104 = scmp.ne.s32.totalorder %s93, %s96
      %p105 = scmp.eq.s32.totalorder %s20, 2
      %p106 = por %p104, %p105
      %p107 = scmp.ne.s32.totalorder %s96, %s97
      %p108 = scmp.eq.s32.totalorder %s20, 0
      %p109 = por %p107, %p108
      %p110 = scmp.ne.s32.totalorder %s96, %s97
      %p111 = scmp.eq.s32.totalorder %s21, 2
      %p112 = por %p110, %p111
      %p114 = scmp.ne.s32.totalorder %s97, %s113
      %p115 = scmp.eq.s32.totalorder %s21, 0
      %p116 = por %p114, %p115
      %p117 = scmp.le.s32.totalorder 1, %s15
      %p118 = scmp.lt.s32.totalorder %s15, 4
      %p119 = pnand %p117, %p118
      %p120 = pneg %p119
      // Predicated region
      $region9: #{tpu_custom_call.1} parent=5 // pred_check
        _
      $region10: #{tpu_custom_call.1} parent=5 // pred_check_branch
        %122 = sbr.rel (%p119) target = $region12
      $region11: #{tpu_custom_call.1} parent=5 // pred_region
        %s123 = ssub.s32 %s15, 1
        // Predicated region
        $region13: #{tpu_custom_call.1} parent=11 // pred_check
          %p124 = pneg %p62
        $region14: #{tpu_custom_call.1} parent=11 // pred_check_branch
          %126 = sbr.rel (%p124) target = $region16
        $region15: #{tpu_custom_call.1} parent=11 // pred_region
          _
        $region16: #{tpu_custom_call.1} parent=11 // pred_fallthru
          _
        // Predicated region
        $region17: #{tpu_custom_call.1} parent=11 // pred_check
          %p127 = pneg %p83
        $region18: #{tpu_custom_call.1} parent=11 // pred_check_branch
          %129 = sbr.rel (%p127) target = $region20
        $region19: #{tpu_custom_call.1} parent=11 // pred_region
          _
        $region20: #{tpu_custom_call.1} parent=11 // pred_fallthru
          _
      $region12: #{tpu_custom_call.1} parent=5 // pred_fallthru
        _
      %p130 = scmp.lt.s32.totalorder %s15, 3
      // Predicated region
      $region21: #{tpu_custom_call.1} parent=5 // pred_check
        %p131 = pneg %p130
      $region22: #{tpu_custom_call.1} parent=5 // pred_check_branch
        %133 = sbr.rel (%p131) target = $region24
      $region23: #{tpu_custom_call.1} parent=5 // pred_region
        // Predicated region
        $region25: #{tpu_custom_call.1} parent=23 // pred_check
          %p134 = pneg %p35
        $region26: #{tpu_custom_call.1} parent=23 // pred_check_branch
          %136 = sbr.rel (%p134) target = $region28
        $region27: #{tpu_custom_call.1} parent=23 // pred_region
          %s137 = sand.u32 %s25, 1
          %s138 = scalar_lea.sflag [#allocation3], %s137
          %s139 = sand.u32 %s25, 1
          %s140 = smul.addr %s139, 8
          %s141 = scalar_lea.vmem [#allocation2], %s140
          %s143 = ssub.s32 128, 128
          %144 = vsyncadd %s138, %s143
          %s145 = smul.addr %s15, 128
          %s146 = scalar_lea.hbm %s0, %s145
          %s148 = sshll.u32 %s141, 4
          %s149 = int_to_ptr.vmem [resolvable:$true] %s148
          %151 = dma.hbm_to_vmem [thread:$0]  %s146, 128, %s149, %s138
        $region28: #{tpu_custom_call.1} parent=23 // pred_fallthru
          _
      $region24: #{tpu_custom_call.1} parent=5 // pred_fallthru
        _
      %p152 = scmp.le.s32.totalorder 1, %s15
      %p153 = scmp.lt.s32.totalorder %s15, 4
      %p154 = pnand %p152, %p153
      %p155 = pneg %p154
      // Predicated region
      $region29: #{tpu_custom_call.1} parent=5 // pred_check
        _
      $region30: #{tpu_custom_call.1} parent=5 // pred_check_branch
        %157 = sbr.rel (%p154) target = $region32
      $region31: #{tpu_custom_call.1} parent=5 // pred_region
        %s158 = ssub.s32 %s15, 1
        %s159 = sand.u32 %s28, 1
        %s160 = scalar_lea.sflag [#allocation3], %s159
        %s161 = sand.u32 %s28, 1
        %s162 = smul.addr %s161, 8
        %s163 = scalar_lea.vmem [#allocation2], %s162
        // Predicated region
        $region33: #{tpu_custom_call.1} parent=31 // pred_check
          %p164 = pneg %p41
        $region34: #{tpu_custom_call.1} parent=31 // pred_check_branch
          %166 = sbr.rel (%p164) target = $region36
        $region35: #{tpu_custom_call.1} parent=31 // pred_region
          %167 = dma.done %s160, 128
        $region36: #{tpu_custom_call.1} parent=31 // pred_fallthru
          _
        %s168 = sand.u32 %s28, 1
        %s169 = scalar_lea.sflag [#allocation3], %s168
        %s170 = sand.u32 %s28, 1
        %s171 = smul.addr %s170, 8
        %s172 = scalar_lea.vmem [#allocation2], %s171
        %p173 = pneg %p41
        %p174 = pneg %p38
        %p175 = pneg %p62
        %p176 = pneg %p59
        %p177 = pneg %p83
        %p178 = pneg %p80
        %p179 = pneg %p109
        %p180 = pneg %p106
        %s181 = sand.u32 %s96, 1
        %s182 = scalar_lea.sflag [#allocation4], %s181
        %s183 = sand.u32 %s96, 1
        %s184 = smul.addr %s183, 8
        %s185 = scalar_lea.vmem [#allocation5], %s184
        %v186 = vld [vmem:[%s163] sm:$0xff]
        %187 = vadd.xlane.f32.xlu0 %v186
        %v188 = vpop.xlane.xlu0 %187
        %v189 = vrcp.pop 128.0
        %v190 = vmul.f32 %v188, %v189
        %v191 = vsub.f32 %v186, %v190
        %v192 = vmul.f32 %v191, %v191
        %193 = vadd.xlane.f32.xlu0 %v192
        %v194 = vpop.xlane.xlu0 %193
        %v195 = vmul.f32 %v194, 0.007874016
        %v196 = vrsqrt.pop %v195
        %v197 = vmul.f32 %v195, %v196
        %vm198 = vcmp.eq.f32.partialorder %v195, inf
        %v199 = vsel %vm198, %v195, %v197
        %vm200 = vcmp.eq.f32.partialorder %v195, 0.0
        %v201 = vand.u32 %v195, 2147483648
        %v202 = vsel %vm200, %v201, %v199
        %v203 = vadd.f32 %v202, 1e-06
        %v204 = vrcp.pop %v203
        %v205 = vld [vmem:[%s1] sm:$0x1]
        %v206 = vmul.f32 %v191, %v204
        %v208 = vlaneseq
        %v209 = vshrl.u32 %v208, 7
        %v210 = vsub.s32 0, %v209
        %v211 = vrot.slane %v205, %v210
        %v213 = vmul.f32 %v211, %v206
        %v214 = vld [vmem:[%s2] sm:$0x1]
        %v216 = vlaneseq
        %v217 = vshrl.u32 %v216, 7
        %v218 = vsub.s32 0, %v217
        %v219 = vrot.slane %v214, %v218
        %v221 = vadd.f32 %v213, %v219
        %222 = vst [vmem:[%s185] sm:$0xff] %v221
        %s223 = sand.u32 %s96, 1
        %s224 = scalar_lea.sflag [#allocation4], %s223
        %s225 = sand.u32 %s96, 1
        %s226 = smul.addr %s225, 8
        %s227 = scalar_lea.vmem [#allocation5], %s226
        // Predicated region
        $region37: #{tpu_custom_call.1} parent=31 // pred_check
          %p228 = pneg %p106
        $region38: #{tpu_custom_call.1} parent=31 // pred_check_branch
          %230 = sbr.rel (%p228) target = $region40
        $region39: #{tpu_custom_call.1} parent=31 // pred_region
          %s232 = ssub.s32 128, 128
          %233 = vsyncadd %s224, %s232
          %s234 = smul.addr %s20, 128
          %s235 = scalar_lea.hbm %s3, %s234
          %s237 = sshll.u32 %s227, 4
          %s238 = int_to_ptr.vmem [resolvable:$true] %s237
          %240 = dma.vmem_to_hbm [thread:$0]  %s238, 128, %s235, %s224
        $region40: #{tpu_custom_call.1} parent=31 // pred_fallthru
          _
      $region32: #{tpu_custom_call.1} parent=5 // pred_fallthru
        _
      %p241 = scmp.le.s32.totalorder 2, %s15
      // Predicated region
      $region41: #{tpu_custom_call.1} parent=5 // pred_check
        %p242 = pneg %p241
      $region42: #{tpu_custom_call.1} parent=5 // pred_check_branch
        %244 = sbr.rel (%p242) target = $region44
      $region43: #{tpu_custom_call.1} parent=5 // pred_region
        %s245 = ssub.s32 %s15, 2
        // Predicated region
        $region45: #{tpu_custom_call.1} parent=43 // pred_check
          %p246 = pneg %p112
        $region46: #{tpu_custom_call.1} parent=43 // pred_check_branch
          %248 = sbr.rel (%p246) target = $region48
        $region47: #{tpu_custom_call.1} parent=43 // pred_region
          %s249 = sand.u32 %s97, 1
          %s250 = scalar_lea.sflag [#allocation4], %s249
          %s251 = sand.u32 %s97, 1
          %s252 = smul.addr %s251, 8
          %s253 = scalar_lea.vmem [#allocation5], %s252
          %254 = dma.done %s250, 128
        $region48: #{tpu_custom_call.1} parent=43 // pred_fallthru
          _
      $region44: #{tpu_custom_call.1} parent=5 // pred_fallthru
        _
    $region6: #{tpu_custom_call.1} parent=1 // loop_footer
      %s19 = sadd.s32 1, %s15
    $region7: #{tpu_custom_call.1} parent=1 // loop_footer_branch
      %14 = sbr.rel target = $region3
    $region8: #{tpu_custom_call.1} parent=1 // loop_exit
      _
    %255 = vsyncpa [#allocation3], 1
    %s256 = scalar_lea.sflag [#allocation3], 1
    %257 = vsyncpa %s256, 1
    %258 = vsyncpa [#allocation4], 1
    %s259 = scalar_lea.sflag [#allocation4], 1
    %260 = vsyncpa %s259, 1

</llo_original>
